<compile_context>
chip_gen: v7x
topology: tpu7x:2x2x1
jax: 0.10.0
libtpu: 0.0.40
codegen_flags: <defaults>
</compile_context>

<pallas_src>
import functools

import jax
import jax.numpy as jnp
from jax import lax
from jax.experimental import pallas as pl
from jax.experimental.pallas import tpu as pltpu


_LANES = 128
_SUBLANES = 8


def _cl_loss_kernel(q_ref, p_ref, n_ref, out_ref, *, inv_temperature, eps,
                    batch, block_rows):
    i = pl.program_id(0)

    # Upcast to f32 in VMEM (inputs may arrive as bf16 to halve HBM traffic;
    # f32 math is required on v5e anyway, which lacks bf16 VPU/EUP).
    q = q_ref[...].astype(jnp.float32)
    p = p_ref[...].astype(jnp.float32)
    n = n_ref[...].astype(jnp.float32)

    # Row-wise reductions over the hidden/lane axis (single pass over data).
    qq = jnp.sum(q * q, axis=-1, keepdims=True)
    pp = jnp.sum(p * p, axis=-1, keepdims=True)
    nn = jnp.sum(n * n, axis=-1, keepdims=True)
    qp = jnp.sum(q * p, axis=-1, keepdims=True)
    qn = jnp.sum(q * n, axis=-1, keepdims=True)

    # nn.CosineSimilarity(dim=-1): a.b / max(||a||*||b||, eps)
    #   == a.b * rsqrt(max(||a||^2 * ||b||^2, eps^2))   (rsqrt -> EUP slot).
    # Note: qq*pp could overflow to +inf for astronomically large-norm rows;
    # rsqrt(inf)=0 then zeroes the cosine instead of NaN-ing (harmless for
    # real embeddings).
    eps2 = eps * eps
    cos_pos = qp * lax.rsqrt(jnp.maximum(qq * pp, eps2))
    cos_neg = qn * lax.rsqrt(jnp.maximum(qq * nn, eps2))

    # CrossEntropy(target=0) over [s_pos, s_neg] == softplus(s_neg - s_pos),
    # in the stable form max(x, 0) + log1p(exp(-|x|)).  This (TB, 1) scalar
    # chain is kept minimal; it is tiny relative to the (TB, D) streaming work
    # and hides under DMA.
    x = (cos_neg - cos_pos) * inv_temperature
    per_example = jnp.maximum(x, 0.0) + jnp.log1p(jnp.exp(-jnp.abs(x)))

    # Mask rows beyond the true batch size: the ragged last tile is padded by
    # Pallas with unspecified data; the select (not multiply) discards any
    # NaN/Inf those rows might produce.  Correctness of the mean depends on
    # this mask.
    rows = lax.broadcasted_iota(jnp.int32, (block_rows, 1), 0)
    valid = (i * block_rows + rows) < batch
    tile_sum = jnp.sum(jnp.where(valid, per_example, 0.0),
                       axis=0, keepdims=True)                  # (1, 1)

    # Lane-dense partial-sum block (unmasked vst); reduced outside the kernel.
    out_ref[...] = jnp.broadcast_to(
        tile_sum.reshape(1, 1, 1), (1, _SUBLANES, _LANES))


def _row_align(itemsize):
    # Sublane packing: (8,128) native tile for f32, (16,128) for bf16, ...
    return max(_SUBLANES, 32 // int(itemsize))


def _vmem_config():
    """(working-set budget bytes, vmem_limit_bytes) tuned per TPU generation."""
    kind = ""
    try:
        kind = jax.devices()[0].device_kind.lower()
    except Exception:
        pass
    if "v5" in kind or "v6" in kind:
        # 128 MiB physical VMEM: larger tiles amortize the ~0.35 us/step cost.
        return 28 * 1024 * 1024, 80 * 1024 * 1024
    # v7x (64 MiB physical, 2 TCs) and unknown chips: stay under the 32 MiB
    # scoped default; moderate tiles + 2-core grid sharding is the right trade.
    return 10 * 1024 * 1024, 32 * 1024 * 1024


def _choose_block_rows(hidden, itemsize, vmem_budget_bytes):
    """Largest aligned row tile whose REAL working set fits the budget.

    Per-row working set for one grid step:
      * 3 inputs x 2 pipeline buffers (BlockSpec double-buffering)
      * 3 f32 upcast copies (only when inputs are sub-32-bit)
      * ~2 live f32 product temporaries from the multiply->reduce chains
    """
    align = _row_align(itemsize)
    upcast = 0 if itemsize >= 4 else 3 * hidden * 4
    bytes_per_row = 3 * 2 * hidden * itemsize + upcast + 2 * hidden * 4
    max_rows = max(1, vmem_budget_bytes // bytes_per_row)
    tb = (max_rows // align) * align
    # Bytes-based per-input-block cap (~4 MiB) instead of a fixed 1024-row cap,
    # so small-D inputs still get >=1 MiB blocks (near-roofline HBM streaming),
    # plus an absolute row bound to keep things sane.
    cap_rows = (4 * 1024 * 1024) // max(1, hidden * itemsize)
    cap_rows = max(align, (cap_rows // align) * align)
    tb = min(tb, cap_rows, 8192)
    return max(align, tb)


def standard_cl_loss(q_emb, p_emb, n_emb, cl_temperature, *, block_rows=None):
    """q_emb, p_emb, n_emb: (B, D) embeddings (f32 or bf16) -> scalar f32 loss."""
    B, D = q_emb.shape
    itemsize = jnp.dtype(q_emb.dtype).itemsize
    align = _row_align(itemsize)
    vmem_budget, vmem_limit = _vmem_config()

    if block_rows is None:
        block_rows = _choose_block_rows(D, itemsize, vmem_budget)
        # Megacore utilization (v7x has 2 TensorCores): with a "parallel"
        # batch grid, never collapse to a single step when the batch can be
        # split -- cap the auto tile at ceil(B/2) rounded up to alignment,
        # which yields exactly 2 (or more) grid steps.
        if B > align:
            half_up = pl.cdiv(B, 2 * align) * align
            block_rows = min(block_rows, half_up)

    if block_rows >= B:
        block_rows = B                          # single full-batch tile
    num_tiles = pl.cdiv(B, block_rows)

    kernel = functools.partial(
        _cl_loss_kernel,
        inv_temperature=1.0 / float(cl_temperature),
        eps=1e-8,
        batch=B,
        block_rows=block_rows,
    )

    in_spec = pl.BlockSpec((block_rows, D), lambda i: (i, 0))
    out_spec = pl.BlockSpec((1, _SUBLANES, _LANES), lambda i: (i, 0, 0))

    partials = pl.pallas_call(
        kernel,
        out_shape=jax.ShapeDtypeStruct((num_tiles, _SUBLANES, _LANES),
                                       jnp.float32),
        grid_spec=pl.GridSpec(
            grid=(num_tiles,),
            in_specs=[in_spec, in_spec, in_spec],
            out_specs=out_spec,
        ),
        compiler_params=pltpu.CompilerParams(
            dimension_semantics=("parallel",),
            vmem_limit_bytes=vmem_limit,
        ),
    )(q_emb, p_emb, n_emb)

    # Tiny finalize outside the kernel: sum of per-tile partial sums / true B.
    return jnp.sum(partials[:, 0, 0]) / B


def encode(token_feats, w_proj, *, out_dtype=jnp.bfloat16):
    """Glue stand-in for model(sentence_feature)['sentence_embedding'].

    Mean pool over tokens then project; the f32->bf16 cast is fused into the
    projection epilogue so the (HBM-bound) loss kernel streams half the bytes.
    """
    pooled = jnp.mean(token_feats, axis=1)          # (B, H)
    return (pooled @ w_proj).astype(out_dtype)      # (B, D)


if __name__ == "__main__":
    key = jax.random.PRNGKey(0)
    B, L, H, D = 20, 8, 32, 128                 # D lane-dense (multiple of 128)
    cl_temperature = 0.05

    k_q, k_p, k_n, k_w = jax.random.split(key, 4)
    # "sentence_features" for query / positive / negative sentences.
    q_tokens = jax.random.normal(k_q, (B, L, H), dtype=jnp.float32)
    p_tokens = jax.random.normal(k_p, (B, L, H), dtype=jnp.float32)
    n_tokens = jax.random.normal(k_n, (B, L, H), dtype=jnp.float32)
    # Deterministic "model" projection weight.
    w_proj = jax.random.normal(k_w, (H, D), dtype=jnp.float32) * 0.1

    # bf16 embeddings: halves HBM traffic for the purely mem-bound loss kernel.
    q_bf = encode(q_tokens, w_proj)
    p_bf = encode(p_tokens, w_proj)
    n_bf = encode(n_tokens, w_proj)
    # f32 copies of the SAME values, for the f32 code path and the reference.
    q_f32, p_f32, n_f32 = (e.astype(jnp.float32) for e in (q_bf, p_bf, n_bf))

    # (a) Auto-tiled bf16 path: forces >=2 grid steps (megacore sharding) and
    #     exercises the ragged-tail mask (B=20 with a 16-row bf16 tile).
    loss_auto = standard_cl_loss(q_bf, p_bf, n_bf, cl_temperature)
    # (b) Explicit small f32 tiles: 3 grid steps, ragged last tile of 4 rows.
    loss_tiled = standard_cl_loss(q_f32, p_f32, n_f32, cl_temperature,
                                  block_rows=8)
    loss_auto, loss_tiled = jax.block_until_ready((loss_auto, loss_tiled))

    # Pure-JAX reference of the torch loss math (on the same embedding values).
    def ref_loss(q, p, n):
        def cos(a, b):
            num = jnp.sum(a * b, axis=-1)
            den = jnp.maximum(
                jnp.linalg.norm(a, axis=-1) * jnp.linalg.norm(b, axis=-1), 1e-8
            )
            return num / den

        s_pos = cos(q, p) / cl_temperature
        s_neg = cos(q, n) / cl_temperature
        logits = jnp.stack([s_pos, s_neg], axis=-1)
        logz = jax.scipy.special.logsumexp(logits, axis=-1)
        return jnp.mean(logz - logits[:, 0])

    ref = ref_loss(q_f32, p_f32, n_f32)
    assert jnp.allclose(loss_auto, ref, atol=1e-5, rtol=1e-5), (loss_auto, ref)
    assert jnp.allclose(loss_tiled, ref, atol=1e-5, rtol=1e-5), (loss_tiled, ref)

    print("KERNEL_OK")
</pallas_src>

<mosaic_0001>
module attributes {stable_mosaic.version = 11 : i64} {
  func.func @_cl_loss_kernel(%arg0: i32, %arg1: memref<16x128xbf16, #tpu.memory_space<vmem>>, %arg2: memref<16x128xbf16, #tpu.memory_space<vmem>>, %arg3: memref<16x128xbf16, #tpu.memory_space<vmem>>, %arg4: memref<1x8x128xf32, #tpu.memory_space<vmem>>) attributes {dimension_semantics = [#tpu.dimension_semantics<parallel>], iteration_bounds = array<i64: 2>, scalar_prefetch = 0 : i64, scratch_operands = 0 : i64, tpu.core_type = #tpu.core_type<tc>, window_params = [{transform_indices = @transform_0, window_bounds = array<i64: 16, 128>}, {transform_indices = @transform_1, window_bounds = array<i64: 16, 128>}, {transform_indices = @transform_2, window_bounds = array<i64: 16, 128>}, {transform_indices = @transform_3, window_bounds = array<i64: 1, 8, 128>}]} {
    %c0 = arith.constant 0 : index
    %c0_0 = arith.constant 0 : index
    %0 = vector.load %arg1[%c0, %c0_0] : memref<16x128xbf16, #tpu.memory_space<vmem>>, vector<16x128xbf16>
    %1 = arith.extf %0 : vector<16x128xbf16> to vector<16x128xf32>
    %c0_1 = arith.constant 0 : index
    %c0_2 = arith.constant 0 : index
    %2 = vector.load %arg2[%c0_1, %c0_2] : memref<16x128xbf16, #tpu.memory_space<vmem>>, vector<16x128xbf16>
    %3 = arith.extf %2 : vector<16x128xbf16> to vector<16x128xf32>
    %c0_3 = arith.constant 0 : index
    %c0_4 = arith.constant 0 : index
    %4 = vector.load %arg3[%c0_3, %c0_4] : memref<16x128xbf16, #tpu.memory_space<vmem>>, vector<16x128xbf16>
    %5 = arith.extf %4 : vector<16x128xbf16> to vector<16x128xf32>
    %6 = arith.mulf %1, %1 : vector<16x128xf32>
    %cst = arith.constant dense<0.000000e+00> : vector<16xf32>
    %7 = vector.multi_reduction <add>, %6, %cst [1] : vector<16x128xf32> to vector<16xf32>
    %8 = vector.shape_cast %7 : vector<16xf32> to vector<16x1xf32>
    %9 = arith.mulf %3, %3 : vector<16x128xf32>
    %cst_5 = arith.constant dense<0.000000e+00> : vector<16xf32>
    %10 = vector.multi_reduction <add>, %9, %cst_5 [1] : vector<16x128xf32> to vector<16xf32>
    %11 = vector.shape_cast %10 : vector<16xf32> to vector<16x1xf32>
    %12 = arith.mulf %5, %5 : vector<16x128xf32>
    %cst_6 = arith.constant dense<0.000000e+00> : vector<16xf32>
    %13 = vector.multi_reduction <add>, %12, %cst_6 [1] : vector<16x128xf32> to vector<16xf32>
    %14 = vector.shape_cast %13 : vector<16xf32> to vector<16x1xf32>
    %15 = arith.mulf %1, %3 : vector<16x128xf32>
    %cst_7 = arith.constant dense<0.000000e+00> : vector<16xf32>
    %16 = vector.multi_reduction <add>, %15, %cst_7 [1] : vector<16x128xf32> to vector<16xf32>
    %17 = vector.shape_cast %16 : vector<16xf32> to vector<16x1xf32>
    %18 = arith.mulf %1, %5 : vector<16x128xf32>
    %cst_8 = arith.constant dense<0.000000e+00> : vector<16xf32>
    %19 = vector.multi_reduction <add>, %18, %cst_8 [1] : vector<16x128xf32> to vector<16xf32>
    %20 = vector.shape_cast %19 : vector<16xf32> to vector<16x1xf32>
    %21 = arith.mulf %8, %11 : vector<16x1xf32>
    %cst_9 = arith.constant 1.000000e-16 : f32
    %22 = vector.broadcast %cst_9 : f32 to vector<16x1xf32>
    %23 = arith.maximumf %21, %22 : vector<16x1xf32>
    %24 = math.rsqrt %23 : vector<16x1xf32>
    %25 = arith.mulf %17, %24 : vector<16x1xf32>
    %26 = arith.mulf %8, %14 : vector<16x1xf32>
    %cst_10 = arith.constant 1.000000e-16 : f32
    %27 = vector.broadcast %cst_10 : f32 to vector<16x1xf32>
    %28 = arith.maximumf %26, %27 : vector<16x1xf32>
    %29 = math.rsqrt %28 : vector<16x1xf32>
    %30 = arith.mulf %20, %29 : vector<16x1xf32>
    %31 = arith.subf %30, %25 : vector<16x1xf32>
    %cst_11 = arith.constant 2.000000e+01 : f32
    %32 = vector.broadcast %cst_11 : f32 to vector<16x1xf32>
    %33 = arith.mulf %31, %32 : vector<16x1xf32>
    %cst_12 = arith.constant 0.000000e+00 : f32
    %34 = vector.broadcast %cst_12 : f32 to vector<16x1xf32>
    %35 = arith.maximumf %33, %34 : vector<16x1xf32>
    %36 = math.absf %33 : vector<16x1xf32>
    %cst_13 = arith.constant 0.000000e+00 : f32
    %37 = vector.broadcast %cst_13 : f32 to vector<16x1xf32>
    %38 = arith.subf %37, %36 : vector<16x1xf32>
    %39 = math.exp %38 : vector<16x1xf32>
    %40 = math.log1p %39 : vector<16x1xf32>
    %41 = arith.addf %35, %40 : vector<16x1xf32>
    %42 = tpu.iota {dimensions = array<i32: 0>} : vector<16x1xi32>
    %c16_i32 = arith.constant 16 : i32
    %43 = arith.muli %arg0, %c16_i32 : i32
    %44 = vector.broadcast %43 : i32 to vector<16x1xi32>
    %45 = arith.addi %44, %42 : vector<16x1xi32>
    %c20_i32 = arith.constant 20 : i32
    %46 = vector.broadcast %c20_i32 : i32 to vector<16x1xi32>
    %47 = arith.cmpi slt, %45, %46 : vector<16x1xi32>
    %cst_14 = arith.constant 0.000000e+00 : f32
    %48 = vector.broadcast %cst_14 : f32 to vector<16x1xf32>
    %49 = arith.select %47, %41, %48 : vector<16x1xi1>, vector<16x1xf32>
    %cst_15 = arith.constant dense<0.000000e+00> : vector<1xf32>
    %50 = vector.multi_reduction <add>, %49, %cst_15 [0] : vector<16x1xf32> to vector<1xf32>
    %51 = vector.shape_cast %50 : vector<1xf32> to vector<1x1xf32>
    %52 = vector.shape_cast %51 : vector<1x1xf32> to vector<1x1x1xf32>
    %53 = vector.shape_cast %52 : vector<1x1x1xf32> to vector<1x1x1xf32>
    %54 = vector.broadcast %53 : vector<1x1x1xf32> to vector<1x8x128xf32>
    %c0_16 = arith.constant 0 : index
    %c0_17 = arith.constant 0 : index
    %c0_18 = arith.constant 0 : index
    %55 = vector.load %arg4[%c0_16, %c0_17, %c0_18] : memref<1x8x128xf32, #tpu.memory_space<vmem>>, vector<1x8x128xf32>
    tpu.vector_store %arg4[%c0_16, %c0_17, %c0_18], %54 {strides = array<i32>} : memref<1x8x128xf32, #tpu.memory_space<vmem>>, vector<1x8x128xf32>,
    return
  }
  func.func @transform_0(%arg0: i32) -> (i32, i32) {
    %c0_i32 = arith.constant 0 : i32
    %c0_i32_0 = arith.constant 0 : i32
    return %arg0, %c0_i32 : i32, i32
  }
  func.func @transform_1(%arg0: i32) -> (i32, i32) {
    %c0_i32 = arith.constant 0 : i32
    %c0_i32_0 = arith.constant 0 : i32
    return %arg0, %c0_i32 : i32, i32
  }
  func.func @transform_2(%arg0: i32) -> (i32, i32) {
    %c0_i32 = arith.constant 0 : i32
    %c0_i32_0 = arith.constant 0 : i32
    return %arg0, %c0_i32 : i32, i32
  }
  func.func @transform_3(%arg0: i32) -> (i32, i32, i32) {
    %c0_i32 = arith.constant 0 : i32
    %c0_i32_0 = arith.constant 0 : i32
    %c0_i32_1 = arith.constant 0 : i32
    return %arg0, %c0_i32, %c0_i32_0 : i32, i32, i32
  }
}

</mosaic_0001>

<llo_original>
// kernel: tpu_custom_call.1
$region0: #{tpu_custom_call.1}
  #allocation0 [shape = 'u32[]', space=smem, size = 0x4, offset = 0x4, fixed_abs, tag = 'smem constant byte address 0x4 - core index']
  #allocation1 [shape = 'u32[144,128]{1,0:T(1,128)}', space=vmem, size = 0x12000, scoped, tag = 'internal scratch']
  %s0 = inlined_call_operand.hbm [shape: bf16[20,128], index: 0, kind: input, shape index: {}]
  %s1 = inlined_call_operand.hbm [shape: bf16[20,128], index: 1, kind: input, shape index: {}]
  %s2 = inlined_call_operand.hbm [shape: bf16[20,128], index: 2, kind: input, shape index: {}]
  %s3 = inlined_call_operand.hbm [shape: f32[2,8,128], index: 3, kind: output, shape index: {}]
  %s4 = sld [smem:[#allocation0]]
  $region57: #{tpu_custom_call.1} parent=0
    _
  %s6 = ssub.s32 1, %s4
  %s7 = scalar_select 0, %s6, %s4
  $region1: #{tpu_custom_call.1} parent=0
    #allocation2 [shape = 'u8[8192]{0}', space=vmem, size = 0x2000, scoped, tag = 'input window, operand 0']
    #allocation3 [shape = 's32[2]{0}', space=sflag, size = 0x8, scoped, tag = 'scoped memory for tpu_custom_call.1']
    #allocation4 [shape = 's32[2]{0}', space=sflag, size = 0x8, scoped, tag = 'scoped memory for tpu_custom_call.1']
    #allocation5 [shape = 'u8[8192]{0}', space=vmem, size = 0x2000, scoped, tag = 'input window, operand 1']
    #allocation6 [shape = 's32[2]{0}', space=sflag, size = 0x8, scoped, tag = 'scoped memory for tpu_custom_call.1']
    #allocation7 [shape = 'u8[8192]{0}', space=vmem, size = 0x2000, scoped, tag = 'input window, operand 2']
    #allocation8 [shape = 'u8[8192]{0}', space=vmem, size = 0x2000, scoped, tag = 'output window, operand 0']
    %8 = vsyncpa [#allocation3], 0
    %s9 = scalar_lea.sflag [#allocation3], 1
    %10 = vsyncpa %s9, 0
    %11 = vsyncpa [#allocation6], 0
    %s12 = scalar_lea.sflag [#allocation6], 1
    %13 = vsyncpa %s12, 0
    %14 = vsyncpa [#allocation4], 0
    %s15 = scalar_lea.sflag [#allocation4], 1
    %16 = vsyncpa %s15, 0
    loop: start=0, step=1, limit=4
    $region2: #{tpu_custom_call.1} parent=1 // loop_pre_header
      _
    $region3: #{tpu_custom_call.1} parent=1 // loop_header
      %s18 = sphi 0, %s22
      %p19 = scmp.ge.s32.totalorder %s18, 4
      %s28 = sphi 0, %s30
      %s31 = sphi 0, %s28
      %s32 = sphi 0, %s31
      %s48 = sphi 0, %s32
      %s54 = sphi 0, %s56
      %s57 = sphi 0, %s54
      %s58 = sphi 0, %s57
      %s74 = sphi 0, %s58
      %s80 = sphi 0, %s82
      %s83 = sphi 0, %s80
      %s84 = sphi 0, %s83
      %s100 = sphi 0, %s84
      %s106 = sphi 0, %s108
      %s109 = sphi 0, %s106
      %s110 = sphi 0, %s109
      %s126 = sphi 0, %s110
    $region4: #{tpu_custom_call.1} parent=1 // loop_header_branch
      %21 = sbr.rel (%p19) target = $region8
    $region5: #{tpu_custom_call.1} parent=1 // loop_body
      %s23 = ssub.s32 %s18, 1
      %s24 = ssub.s32 %s18, 2
      %s25 = sadd.s32 %s18, 1
      %s26 = ssub.s32 %s18, %s25
      %p27 = scmp.eq.s32.totalorder %s26, 0
      %s29 = sadd.s32 %s28, 1
      %s30 = scalar_select %p27, %s28, %s29
      %p33 = pneg %p27
      %p34 = scmp.eq.s32.totalorder %s18, 1
      %p35 = por %p33, %p34
      %p36 = scmp.ne.s32.totalorder %s28, %s31
      %p37 = scmp.eq.s32.totalorder %s18, 0
      %p38 = por %p36, %p37
      %p39 = scmp.ne.s32.totalorder %s28, %s31
      %p40 = scmp.eq.s32.totalorder %s23, 1
      %p41 = por %p39, %p40
      %p42 = scmp.ne.s32.totalorder %s31, %s32
      %p43 = scmp.eq.s32.totalorder %s23, 0
      %p44 = por %p42, %p43
      %p45 = scmp.ne.s32.totalorder %s31, %s32
      %p46 = scmp.eq.s32.totalorder %s24, 1
      %p47 = por %p45, %p46
      %p49 = scmp.ne.s32.totalorder %s32, %s48
      %p50 = scmp.eq.s32.totalorder %s24, 0
      %p51 = por %p49, %p50
      %s52 = ssub.s32 %s18, %s25
      %p53 = scmp.eq.s32.totalorder %s52, 0
      %s55 = sadd.s32 %s54, 1
      %s56 = scalar_select %p53, %s54, %s55
      %p59 = pneg %p53
      %p60 = scmp.eq.s32.totalorder %s18, 1
      %p61 = por %p59, %p60
      %p62 = scmp.ne.s32.totalorder %s54, %s57
      %p63 = scmp.eq.s32.totalorder %s18, 0
      %p64 = por %p62, %p63
      %p65 = scmp.ne.s32.totalorder %s54, %s57
      %p66 = scmp.eq.s32.totalorder %s23, 1
      %p67 = por %p65, %p66
      %p68 = scmp.ne.s32.totalorder %s57, %s58
      %p69 = scmp.eq.s32.totalorder %s23, 0
      %p70 = por %p68, %p69
      %p71 = scmp.ne.s32.totalorder %s57, %s58
      %p72 = scmp.eq.s32.totalorder %s24, 1
      %p73 = por %p71, %p72
      %p75 = scmp.ne.s32.totalorder %s58, %s74
      %p76 = scmp.eq.s32.totalorder %s24, 0
      %p77 = por %p75, %p76
      %s78 = ssub.s32 %s18, %s25
      %p79 = scmp.eq.s32.totalorder %s78, 0
      %s81 = sadd.s32 %s80, 1
      %s82 = scalar_select %p79, %s80, %s81
      %p85 = pneg %p79
      %p86 = scmp.eq.s32.totalorder %s18, 1
      %p87 = por %p85, %p86
      %p88 = scmp.ne.s32.totalorder %s80, %s83
      %p89 = scmp.eq.s32.totalorder %s18, 0
      %p90 = por %p88, %p89
      %p91 = scmp.ne.s32.totalorder %s80, %s83
      %p92 = scmp.eq.s32.totalorder %s23, 1
      %p93 = por %p91, %p92
      %p94 = scmp.ne.s32.totalorder %s83, %s84
      %p95 = scmp.eq.s32.totalorder %s23, 0
      %p96 = por %p94, %p95
      %p97 = scmp.ne.s32.totalorder %s83, %s84
      %p98 = scmp.eq.s32.totalorder %s24, 1
      %p99 = por %p97, %p98
      %p101 = scmp.ne.s32.totalorder %s84, %s100
      %p102 = scmp.eq.s32.totalorder %s24, 0
      %p103 = por %p101, %p102
      %s104 = ssub.s32 %s18, %s25
      %p105 = scmp.eq.s32.totalorder %s104, 0
      %s107 = sadd.s32 %s106, 1
      %s108 = scalar_select %p105, %s106, %s107
      %p111 = pneg %p105
      %p112 = scmp.eq.s32.totalorder %s18, 1
      %p113 = por %p111, %p112
      %p114 = scmp.ne.s32.totalorder %s106, %s109
      %p115 = scmp.eq.s32.totalorder %s18, 0
      %p116 = por %p114, %p115
      %p117 = scmp.ne.s32.totalorder %s106, %s109
      %p118 = scmp.eq.s32.totalorder %s23, 1
      %p119 = por %p117, %p118
      %p120 = scmp.ne.s32.totalorder %s109, %s110
      %p121 = scmp.eq.s32.totalorder %s23, 0
      %p122 = por %p120, %p121
      %p123 = scmp.ne.s32.totalorder %s109, %s110
      %p124 = scmp.eq.s32.totalorder %s24, 1
      %p125 = por %p123, %p124
      %p127 = scmp.ne.s32.totalorder %s110, %s126
      %p128 = scmp.eq.s32.totalorder %s24, 0
      %p129 = por %p127, %p128
      %p130 = scmp.le.s32.totalorder 1, %s18
      %p131 = scmp.lt.s32.totalorder %s18, 3
      %p132 = pnand %p130, %p131
      %p133 = pneg %p132
      // Predicated region
      $region9: #{tpu_custom_call.1} parent=5 // pred_check
        _
      $region10: #{tpu_custom_call.1} parent=5 // pred_check_branch
        %135 = sbr.rel (%p132) target = $region12
      $region11: #{tpu_custom_call.1} parent=5 // pred_region
        %s136 = ssub.s32 %s18, 1
      $region12: #{tpu_custom_call.1} parent=5 // pred_fallthru
        _
      %p137 = scmp.lt.s32.totalorder %s18, 2
      // Predicated region
      $region13: #{tpu_custom_call.1} parent=5 // pred_check
        %p138 = pneg %p137
      $region14: #{tpu_custom_call.1} parent=5 // pred_check_branch
        %140 = sbr.rel (%p138) target = $region16
      $region15: #{tpu_custom_call.1} parent=5 // pred_region
        // Predicated region
        $region17: #{tpu_custom_call.1} parent=15 // pred_check
          %p141 = pneg %p38
        $region18: #{tpu_custom_call.1} parent=15 // pred_check_branch
          %143 = sbr.rel (%p141) target = $region20
        $region19: #{tpu_custom_call.1} parent=15 // pred_region
          %s144 = sand.u32 %s28, 1
          %s145 = scalar_lea.sflag [#allocation3], %s144
          %s146 = sand.u32 %s28, 1
          %s147 = smul.addr %s146, 8
          %s148 = scalar_lea.vmem [#allocation2], %s147
          %s149 = smul.u32 2, %s18
          %s150 = ssub.s32 3, %s149
          %p151 = scmp.lt.s32.totalorder %s150, 2
          %s152 = scalar_select %p151, %s150, 2
          %s153 = smul.u32 64, %s152
          %s155 = ssub.s32 128, %s153
          %156 = vsyncadd %s145, %s155
          %p157 = scmp.ne.s32.totalorder 0, %s153
          %s158 = smul.addr %s149, 64
          %s159 = scalar_lea.hbm %s0, %s158
          %s160 = smul.u32 4, %s152
          %s161 = sshll.u32 %s148, 4
          %s162 = int_to_ptr.vmem [resolvable:$true] %s161
          %s163 = sshll.u32 %s160, 4
          %167 = dma.hbm_to_vmem [thread:$0]  (%p157), %s159, %s163, %s162, %s145, 64, 64, 4
        $region20: #{tpu_custom_call.1} parent=15 // pred_fallthru
          _
        // Predicated region
        $region21: #{tpu_custom_call.1} parent=15 // pred_check
          %p168 = pneg %p64
        $region22: #{tpu_custom_call.1} parent=15 // pred_check_branch
          %170 = sbr.rel (%p168) target = $region24
        $region23: #{tpu_custom_call.1} parent=15 // pred_region
          %s171 = sand.u32 %s18, 1
          %s172 = scalar_lea.sflag [#allocation6], %s171
          %s173 = sand.u32 %s54, 1
          %s174 = smul.addr %s173, 8
          %s175 = scalar_lea.vmem [#allocation5], %s174
          %s176 = smul.u32 2, %s18
          %s177 = ssub.s32 3, %s176
          %p178 = scmp.lt.s32.totalorder %s177, 2
          %s179 = scalar_select %p178, %s177, 2
          %s180 = smul.u32 64, %s179
          %s182 = ssub.s32 128, %s180
          %183 = vsyncadd %s172, %s182
          %p184 = scmp.ne.s32.totalorder 0, %s180
          %s185 = smul.addr %s176, 64
          %s186 = scalar_lea.hbm %s1, %s185
          %s187 = smul.u32 4, %s179
          %s188 = sshll.u32 %s175, 4
          %s189 = int_to_ptr.vmem [resolvable:$true] %s188
          %s190 = sshll.u32 %s187, 4
          %194 = dma.hbm_to_vmem [thread:$0]  (%p184), %s186, %s190, %s189, %s172, 64, 64, 4
        $region24: #{tpu_custom_call.1} parent=15 // pred_fallthru
          _
        // Predicated region
        $region25: #{tpu_custom_call.1} parent=15 // pred_check
          %p195 = pneg %p90
        $region26: #{tpu_custom_call.1} parent=15 // pred_check_branch
          %197 = sbr.rel (%p195) target = $region28
        $region27: #{tpu_custom_call.1} parent=15 // pred_region
          %s198 = sand.u32 %s18, 1
          %s199 = scalar_lea.sflag [#allocation6], %s198
          %s200 = sand.u32 %s80, 1
          %s201 = smul.addr %s200, 8
          %s202 = scalar_lea.vmem [#allocation7], %s201
          %s203 = smul.u32 2, %s18
          %s204 = ssub.s32 3, %s203
          %p205 = scmp.lt.s32.totalorder %s204, 2
          %s206 = scalar_select %p205, %s204, 2
          %s207 = smul.u32 64, %s206
          %s209 = ssub.s32 128, %s207
          %210 = vsyncadd %s199, %s209
          %p211 = scmp.ne.s32.totalorder 0, %s207
          %s212 = smul.addr %s203, 64
          %s213 = scalar_lea.hbm %s2, %s212
          %s214 = smul.u32 4, %s206
          %s215 = sshll.u32 %s202, 4
          %s216 = int_to_ptr.vmem [resolvable:$true] %s215
          %s217 = sshll.u32 %s214, 4
          %221 = dma.hbm_to_vmem [thread:$0]  (%p211), %s213, %s217, %s216, %s199, 64, 64, 4
        $region28: #{tpu_custom_call.1} parent=15 // pred_fallthru
          _
      $region16: #{tpu_custom_call.1} parent=5 // pred_fallthru
        _
      %p222 = scmp.le.s32.totalorder 1, %s18
      %p223 = scmp.lt.s32.totalorder %s18, 3
      %p224 = pnand %p222, %p223
      %p225 = pneg %p224
      // Predicated region
      $region29: #{tpu_custom_call.1} parent=5 // pred_check
        _
      $region30: #{tpu_custom_call.1} parent=5 // pred_check_branch
        %227 = sbr.rel (%p224) target = $region32
      $region31: #{tpu_custom_call.1} parent=5 // pred_region
        %s228 = ssub.s32 %s18, 1
        %s229 = sand.u32 %s31, 1
        %s230 = scalar_lea.sflag [#allocation3], %s229
        %s231 = sand.u32 %s31, 1
        %s232 = smul.addr %s231, 8
        %s233 = scalar_lea.vmem [#allocation2], %s232
        // Predicated region
        $region33: #{tpu_custom_call.1} parent=31 // pred_check
          %p234 = pneg %p44
        $region34: #{tpu_custom_call.1} parent=31 // pred_check_branch
          %236 = sbr.rel (%p234) target = $region36
        $region35: #{tpu_custom_call.1} parent=31 // pred_region
          %237 = dma.done %s230, 128
        $region36: #{tpu_custom_call.1} parent=31 // pred_fallthru
          _
        %s238 = sand.u32 %s23, 1
        %s239 = scalar_lea.sflag [#allocation6], %s238
        %s240 = sand.u32 %s57, 1
        %s241 = smul.addr %s240, 8
        %s242 = scalar_lea.vmem [#allocation5], %s241
        // Predicated region
        $region37: #{tpu_custom_call.1} parent=31 // pred_check
          %p243 = pneg %p70
        $region38: #{tpu_custom_call.1} parent=31 // pred_check_branch
          %245 = sbr.rel (%p243) target = $region40
        $region39: #{tpu_custom_call.1} parent=31 // pred_region
          %246 = dma.done %s239, 128
        $region40: #{tpu_custom_call.1} parent=31 // pred_fallthru
          _
        %s247 = sand.u32 %s23, 1
        %s248 = scalar_lea.sflag [#allocation6], %s247
        %s249 = sand.u32 %s83, 1
        %s250 = smul.addr %s249, 8
        %s251 = scalar_lea.vmem [#allocation7], %s250
        // Predicated region
        $region41: #{tpu_custom_call.1} parent=31 // pred_check
          %p252 = pneg %p96
        $region42: #{tpu_custom_call.1} parent=31 // pred_check_branch
          %254 = sbr.rel (%p252) target = $region44
        $region43: #{tpu_custom_call.1} parent=31 // pred_region
          %255 = dma.done %s248, 128
        $region44: #{tpu_custom_call.1} parent=31 // pred_fallthru
          _
        %s256 = sand.u32 %s31, 1
        %s257 = scalar_lea.sflag [#allocation3], %s256
        %s258 = sand.u32 %s31, 1
        %s259 = smul.addr %s258, 8
        %s260 = scalar_lea.vmem [#allocation2], %s259
        %p261 = pneg %p44
        %p262 = pneg %p41
        %s263 = sand.u32 %s23, 1
        %s264 = scalar_lea.sflag [#allocation6], %s263
        %s265 = sand.u32 %s57, 1
        %s266 = smul.addr %s265, 8
        %s267 = scalar_lea.vmem [#allocation5], %s266
        %p268 = pneg %p70
        %p269 = pneg %p67
        %s270 = sand.u32 %s23, 1
        %s271 = scalar_lea.sflag [#allocation6], %s270
        %s272 = sand.u32 %s83, 1
        %s273 = smul.addr %s272, 8
        %s274 = scalar_lea.vmem [#allocation7], %s273
        %p275 = pneg %p96
        %p276 = pneg %p93
        %p277 = pneg %p122
        %p278 = pneg %p119
        %s279 = sand.u32 %s109, 1
        %s280 = scalar_lea.sflag [#allocation4], %s279
        %s281 = sand.u32 %s109, 1
        %s282 = smul.addr %s281, 8
        %s283 = scalar_lea.vmem [#allocation8], %s282
        %s284 = smul.u32 2, %s23
        %s285 = ssub.s32 3, %s284
        %p286 = scmp.lt.s32.totalorder %s285, 2
        %s287 = scalar_select %p286, %s285, 2
        %s288 = smul.u32 64, %s287
        %s289 = smul.u32 2, %s23
        %s290 = ssub.s32 3, %s289
        %p291 = scmp.lt.s32.totalorder %s290, 2
        %s292 = scalar_select %p291, %s290, 2
        %s293 = smul.u32 64, %s292
        %s294 = smul.u32 2, %s23
        %s295 = ssub.s32 3, %s294
        %p296 = scmp.lt.s32.totalorder %s295, 2
        %s297 = scalar_select %p296, %s295, 2
        %s298 = smul.u32 64, %s297
        %v299 = vld [vmem:[%s233] sm:$0xf]
        %v300 = vld [vmem:[%s233 + $0x4] sm:$0xf]
        %v301 = vunpack.c.l.bf16 %v299
        %v302 = vunpack.c.l.bf16 %v300
        %v303 = vld [vmem:[%s242] sm:$0xf]
        %v304 = vld [vmem:[%s242 + $0x4] sm:$0xf]
        %v305 = vunpack.c.l.bf16 %v303
        %v306 = vunpack.c.l.bf16 %v304
        %v307 = vld [vmem:[%s251] sm:$0xf]
        %v308 = vld [vmem:[%s251 + $0x4] sm:$0xf]
        %v309 = vunpack.c.l.bf16 %v307
        %v310 = vunpack.c.l.bf16 %v308
        %v311 = vmul.f32 %v301, %v301
        %v312 = vmul.f32 %v302, %v302
        %313 = vadd.xlane.f32.xlu0 %v311
        %v314 = vpop.xlane.xlu0 %313
        %315 = vadd.xlane.f32.xlu0 %v312
        %v316 = vpop.xlane.xlu0 %315
        %v317 = vmul.f32 %v305, %v305
        %v318 = vmul.f32 %v306, %v306
        %319 = vadd.xlane.f32.xlu0 %v317
        %v320 = vpop.xlane.xlu0 %319
        %321 = vadd.xlane.f32.xlu0 %v318
        %v322 = vpop.xlane.xlu0 %321
        %v323 = vmul.f32 %v309, %v309
        %v324 = vmul.f32 %v310, %v310
        %325 = vadd.xlane.f32.xlu0 %v323
        %v326 = vpop.xlane.xlu0 %325
        %327 = vadd.xlane.f32.xlu0 %v324
        %v328 = vpop.xlane.xlu0 %327
        %v329 = vmul.f32 %v301, %v305
        %v330 = vmul.f32 %v302, %v306
        %331 = vadd.xlane.f32.xlu0 %v329
        %v332 = vpop.xlane.xlu0 %331
        %333 = vadd.xlane.f32.xlu0 %v330
        %v334 = vpop.xlane.xlu0 %333
        %v335 = vmul.f32 %v301, %v309
        %v336 = vmul.f32 %v302, %v310
        %337 = vadd.xlane.f32.xlu0 %v335
        %v338 = vpop.xlane.xlu0 %337
        %339 = vadd.xlane.f32.xlu0 %v336
        %v340 = vpop.xlane.xlu0 %339
        %v341 = vmul.f32 %v314, %v320
        %v342 = vmul.f32 %v316, %v322
        %v343 = vmax.f32 %v341, 1e-16
        %v344 = vmax.f32 %v342, 1e-16
        %v345 = vrsqrt.pop %v343
        %v346 = vrsqrt.pop %v344
        %v347 = vmul.f32 %v332, %v345
        %v348 = vmul.f32 %v334, %v346
        %v349 = vmul.f32 %v314, %v326
        %v350 = vmul.f32 %v316, %v328
        %v351 = vmax.f32 %v349, 1e-16
        %v352 = vmax.f32 %v350, 1e-16
        %v353 = vrsqrt.pop %v351
        %v354 = vrsqrt.pop %v352
        %v355 = vmul.f32 %v338, %v353
        %v356 = vmul.f32 %v340, %v354
        %v357 = vsub.f32 %v355, %v347
        %v358 = vsub.f32 %v356, %v348
        %v359 = vmul.f32 %v357, 20.0
        %v360 = vmul.f32 %v358, 20.0
        %v361 = vmax.f32 %v359, 0.0
        %v362 = vmax.f32 %v360, 0.0
        %v363 = vand.u32 2147483647, %v359
        %v364 = vand.u32 2147483647, %v360
        %v365 = vsub.f32 0.0, %v363
        %v366 = vsub.f32 0.0, %v364
        %v367 = vmul.f32 %v365, 1.442695
        %v368 = vpow.pop %v367
        %v369 = vmul.f32 %v366, 1.442695
        %v370 = vpow.pop %v369
        %v371 = vadd.f32 %v368, 1.0
        %v372 = vlog2.pop %v371
        %v373 = vmul.f32 %v372, 0.6931472
        %v374 = vmul.f32 -0.5, %v368
        %v375 = vadd.f32 %v374, 1.0
        %v376 = vmul.f32 %v375, %v368
        %v377 = vand.u32 2147483647, %v368
        %vm378 = vcmp.lt.f32.partialorder %v377, 0.0004427343
        %v379 = vsel %vm378, %v376, %v373
        %v380 = vadd.f32 %v370, 1.0
        %v381 = vlog2.pop %v380
        %v382 = vmul.f32 %v381, 0.6931472
        %v383 = vmul.f32 -0.5, %v370
        %v384 = vadd.f32 %v383, 1.0
        %v385 = vmul.f32 %v384, %v370
        %v386 = vand.u32 2147483647, %v370
        %vm387 = vcmp.lt.f32.partialorder %v386, 0.0004427343
        %v388 = vsel %vm387, %v385, %v382
        %v389 = vadd.f32 %v361, %v379
        %v390 = vadd.f32 %v362, %v388
        %v391 = vlaneseq
        %v392 = vshrl.u32 %v391, 7
        %v393 = vadd.s32 %v392, 8
        %s394 = smul.u32 %s23, 16
        %v395 = vstv %s394
        %v396 = vadd.s32 %v395, %v392
        %v397 = vadd.s32 %v395, %v393
        %vm398 = vcmp.lt.s32.totalorder %v396, 20
        %vm399 = vcmp.lt.s32.totalorder %v397, 20
        %v400 = vsel %vm398, %v389, 0.0
        %v401 = vsel %vm399, %v390, 0.0
        %v402 = vadd.f32 %v400, %v401
        %v403 = vrot.slane %v402, 4
        %v404 = vadd.f32 %v402, %v403
        %v405 = vrot.slane %v404, 2
        %v406 = vadd.f32 %v404, %v405
        %v407 = vrot.slane %v406, 1
        %v408 = vadd.f32 %v406, %v407
        %409 = vst [vmem:[%s283] sm:$0xff] %v408
        %s410 = sand.u32 %s109, 1
        %s411 = scalar_lea.sflag [#allocation4], %s410
        %s412 = sand.u32 %s109, 1
        %s413 = smul.addr %s412, 8
        %s414 = scalar_lea.vmem [#allocation8], %s413
        // Predicated region
        $region45: #{tpu_custom_call.1} parent=31 // pred_check
          %p415 = pneg %p119
        $region46: #{tpu_custom_call.1} parent=31 // pred_check_branch
          %417 = sbr.rel (%p415) target = $region48
        $region47: #{tpu_custom_call.1} parent=31 // pred_region
          %s419 = ssub.s32 128, 128
          %420 = vsyncadd %s411, %s419
          %s421 = smul.addr %s23, 128
          %s422 = scalar_lea.hbm %s3, %s421
          %s424 = sshll.u32 %s414, 4
          %s425 = int_to_ptr.vmem [resolvable:$true] %s424
          %427 = dma.vmem_to_hbm [thread:$0]  %s425, 128, %s422, %s411
        $region48: #{tpu_custom_call.1} parent=31 // pred_fallthru
          _
      $region32: #{tpu_custom_call.1} parent=5 // pred_fallthru
        _
      %p428 = scmp.le.s32.totalorder 2, %s18
      // Predicated region
      $region49: #{tpu_custom_call.1} parent=5 // pred_check
        %p429 = pneg %p428
      $region50: #{tpu_custom_call.1} parent=5 // pred_check_branch
        %431 = sbr.rel (%p429) target = $region52
      $region51: #{tpu_custom_call.1} parent=5 // pred_region
        %s432 = ssub.s32 %s18, 2
        // Predicated region
        $region53: #{tpu_custom_call.1} parent=51 // pred_check
          %p433 = pneg %p125
        $region54: #{tpu_custom_call.1} parent=51 // pred_check_branch
          %435 = sbr.rel (%p433) target = $region56
        $region55: #{tpu_custom_call.1} parent=51 // pred_region
          %s436 = sand.u32 %s110, 1
          %s437 = scalar_lea.sflag [#allocation4], %s436
          %s438 = sand.u32 %s110, 1
          %s439 = smul.addr %s438, 8
          %s440 = scalar_lea.vmem [#allocation8], %s439
          %441 = dma.done %s437, 128
        $region56: #{tpu_custom_call.1} parent=51 // pred_fallthru
          _
      $region52: #{tpu_custom_call.1} parent=5 // pred_fallthru
        _
    $region6: #{tpu_custom_call.1} parent=1 // loop_footer
      %s22 = sadd.s32 1, %s18
    $region7: #{tpu_custom_call.1} parent=1 // loop_footer_branch
      %17 = sbr.rel target = $region3
    $region8: #{tpu_custom_call.1} parent=1 // loop_exit
      _
    %442 = vsyncpa [#allocation3], 1
    %s443 = scalar_lea.sflag [#allocation3], 1
    %444 = vsyncpa %s443, 1
    %445 = vsyncpa [#allocation6], 1
    %s446 = scalar_lea.sflag [#allocation6], 1
    %447 = vsyncpa %s446, 1
    %448 = vsyncpa [#allocation4], 1
    %s449 = scalar_lea.sflag [#allocation4], 1
    %450 = vsyncpa %s449, 1

</llo_original>
